<compile_context>
chip_gen: v5e
topology: v5e:2x2
jax: 0.10.0
libtpu: 0.0.40
codegen_flags: <defaults>
</compile_context>

<pallas_src>
import jax
import jax.numpy as jnp
from jax.experimental import pallas as pl
from jax.experimental.pallas import tpu as pltpu


def _round_up(a, m):
    return ((a + m - 1) // m) * m


def fm_kernel(x_ref, vm_ref, b_ref, o_ref, xm_acc, x2_acc):
    # x_ref:   (tb, tp)    streamed input tile (f32 or bf16)
    # vm_ref:  (tp, k+2)   packed [v | w | vsq] in f32
    # b_ref:   (1, 1)      bias scalar in SMEM (f32)
    # o_ref:   (tb, 1)     output tile (f32), resident across the p axis
    # xm_acc:  (tb, k+1)   f32 accumulator for x @ [v | w]
    # x2_acc:  (tb, 1)     f32 accumulator for (x*x) @ vsq
    j = pl.program_id(1)

    @pl.when(j == 0)
    def _init():
        xm_acc[...] = jnp.zeros_like(xm_acc)
        x2_acc[...] = jnp.zeros_like(x2_acc)

    x = x_ref[...]
    k = vm_ref.shape[1] - 2

    vw = vm_ref[:, : k + 1]                       # (tp, k+1) f32, small
    if jnp.dtype(x.dtype) == jnp.dtype(jnp.bfloat16):
        # Native bf16 MXU path when x streams as bf16; accumulation stays f32.
        vw = vw.astype(jnp.bfloat16)
    xm_acc[...] += jnp.dot(x, vw, preferred_element_type=jnp.float32)

    # Second interaction term collapsed to a single mat-vec against
    # vsq = sum_k v**2 (kept in f32 for the cancellation-sensitive pair term).
    xf = x.astype(jnp.float32)
    x2_acc[...] += jnp.dot(xf * xf, vm_ref[:, k + 1:],
                           preferred_element_type=jnp.float32)

    @pl.when(j == pl.num_programs(1) - 1)
    def _finalize():
        xm = xm_acc[...]                          # (tb, k+1)
        lin = xm[:, k:]                           # (tb, 1) linear part
        # sum over latent columns only: sum(xm^2) - lin^2 == sum_k (x @ v)^2
        pair = (jnp.sum(xm * xm, axis=1, keepdims=True)
                - lin * lin - x2_acc[...])        # (tb, 1)
        o_ref[...] = (lin + b_ref[0, 0] + 0.5 * pair).astype(o_ref.dtype)


def factorization_machine(x, v, w, b, *, tb=None, tp=None):
    """FactorizationMachine forward.

    x: (B, p) f32 or bf16, v: (p, k), w: (p, 1) (linear weight stored
    transposed), b: scalar / (1,) / (1, 1).  Returns (B, 1) float32.
    """
    B, p = x.shape
    pv, k = v.shape
    assert pv == p, "v must be (p, k)"
    isz = jnp.dtype(x.dtype).itemsize

    # ---- parameter packing (once, in the wrapper) --------------------------
    # M = [v | w | sum_k v**2]  (p, k+2), kept in f32:
    #  * vsq column must stay f32 (pair term relies on cancellation),
    #  * [v|w] is tiny & grid-resident so f32 storage costs ~nothing; it is
    #    cast to bf16 in-kernel when x streams as bf16.
    vf = v.astype(jnp.float32)
    vm = jnp.concatenate(
        [vf,
         w.astype(jnp.float32).reshape(p, 1),
         jnp.sum(vf * vf, axis=1, keepdims=True)],
        axis=1)                                                  # (p, k+2)
    b = jnp.asarray(b, dtype=jnp.float32).reshape(1, 1)

    # ---- feature (p) tiling -------------------------------------------------
    TP_MAX = 1024
    if tp is None:
        tp = p if p <= TP_MAX else TP_MAX
    if tp != p and tp % 128 != 0:
        raise ValueError("tp must equal p or be a multiple of 128")
    Pp = _round_up(p, tp)

    # ---- generation-aware VMEM budget --------------------------------------
    try:
        vmem_cap = int(pltpu.get_tpu_info().vmem_capacity_bytes)
    except Exception:
        vmem_cap = 64 * 2**20            # conservative (v7x-sized) fallback
    vmem_ceiling = max(16 * 2**20, int(0.72 * vmem_cap))

    tp_lanes = _round_up(tp, 128)
    vm_blk_bytes = 2 * _round_up(tp, 8) * _round_up(k + 2, 128) * 4
    # Per-output-row VMEM cost, including (8,128) lane padding of every block:
    per_row = (2 * tp_lanes * isz                 # x tile, double buffered
               + 2 * 128 * 4                      # (tb,1) out tile, double buffered
               + _round_up(k + 1, 128) * 4        # xm accumulator scratch
               + 128 * 4)                         # x2 accumulator scratch

    if tb is None:
        budget = vmem_ceiling - vm_blk_bytes - (4 << 20)
        tb = budget // per_row
        tb = min(tb, (16 << 20) // (tp_lanes * isz))   # ~16 MiB per x buffer
        tb = max(8, (tb // 8) * 8)
        b8 = _round_up(B, 8)
        tb = min(tb, b8)
        # Keep the parallel batch axis >= 2 steps so both v7x TensorCores work.
        if b8 >= 16 and tb > (b8 + 1) // 2:
            tb = (b8 + 1) // 2
    tb = max(8, _round_up(int(tb), 8))
    Bp = _round_up(B, tb)

    # Zero rows/cols are exact no-ops for every term; padded rows output b and
    # are sliced off.  (Padding copies x once; only happens when shapes are ragged.)
    if Bp != B or Pp != p:
        x = jnp.pad(x, ((0, Bp - B), (0, Pp - p)))
    if Pp != p:
        vm = jnp.pad(vm, ((0, Pp - p), (0, 0)))

    grid = (Bp // tb, Pp // tp)

    vmem_need = (2 * tb * tp_lanes * isz
                 + vm_blk_bytes
                 + 2 * tb * 128 * 4
                 + tb * _round_up(k + 1, 128) * 4
                 + tb * 128 * 4
                 + (2 << 20))
    vmem_limit = int(min(max(vmem_need, 16 * 2**20), vmem_ceiling))

    cost = pl.CostEstimate(
        flops=2 * Bp * Pp * (k + 2) + 8 * Bp * (k + 2),
        transcendentals=0,
        bytes_accessed=Bp * Pp * isz + Pp * (k + 2) * 4 + Bp * 4,
    )

    out = pl.pallas_call(
        fm_kernel,
        out_shape=jax.ShapeDtypeStruct((Bp, 1), jnp.float32),
        grid_spec=pltpu.PrefetchScalarGridSpec(
            num_scalar_prefetch=0,
            grid=grid,
            in_specs=[
                pl.BlockSpec((tb, tp), lambda i, j: (i, j)),       # x (streamed)
                pl.BlockSpec((tp, k + 2), lambda i, j: (j, 0)),    # [v|w|vsq]
                pl.BlockSpec(memory_space=pltpu.MemorySpace.SMEM),  # bias scalar
            ],
            out_specs=pl.BlockSpec((tb, 1), lambda i, j: (i, 0)),
            scratch_shapes=[
                pltpu.VMEM((tb, k + 1), jnp.float32),   # xm accumulator
                pltpu.VMEM((tb, 1), jnp.float32),       # x2 accumulator
            ],
        ),
        compiler_params=pltpu.CompilerParams(
            dimension_semantics=("parallel", "arbitrary"),
            vmem_limit_bytes=vmem_limit,
        ),
        cost_estimate=cost,
    )(x, vm, b)

    return out[:B]


def reference_fm(x, v, w, b):
    x = x.astype(jnp.float32)
    linear_part = x @ w + jnp.asarray(b, jnp.float32).reshape(1, 1)
    inter1 = (x @ v) ** 2
    inter2 = (x * x) @ (v * v)
    pair = jnp.sum(inter1 - inter2, axis=1, keepdims=True)
    return linear_part + 0.5 * pair


if __name__ == "__main__":
    def make_params(key, p, k):
        kv, kw, kb = jax.random.split(key, 3)
        v = jax.random.uniform(kv, (p, k), dtype=jnp.float32) / 10.0
        bound = 1.0 / float(p) ** 0.5
        w = jax.random.uniform(kw, (p, 1), minval=-bound, maxval=bound,
                               dtype=jnp.float32)
        b = jax.random.uniform(kb, (1, 1), minval=-bound, maxval=bound,
                               dtype=jnp.float32)
        return v, w, b

    # --- Test A: small f32, single grid step --------------------------------
    B, p, k = 8, 32, 16
    k0, k1 = jax.random.split(jax.random.PRNGKey(0))
    x = jax.random.normal(k0, (B, p), dtype=jnp.float32)
    v, w, b = make_params(k1, p, k)
    out = jax.block_until_ready(factorization_machine(x, v, w, b))
    ref = reference_fm(x, v, w, b)
    assert out.shape == (B, 1)
    assert jnp.allclose(out, ref, atol=1e-4, rtol=1e-4), "mismatch (f32 small)"

    # --- Test B: ragged batch + p-tiling (accumulator path) -----------------
    B2, p2, k2 = 300, 256, 8
    k0, k1 = jax.random.split(jax.random.PRNGKey(1))
    x2 = jax.random.normal(k0, (B2, p2), dtype=jnp.float32)
    v2, w2, b2 = make_params(k1, p2, k2)
    out2 = jax.block_until_ready(
        factorization_machine(x2, v2, w2, b2, tb=128, tp=128))
    ref2 = reference_fm(x2, v2, w2, b2)
    assert out2.shape == (B2, 1)
    assert jnp.allclose(out2, ref2, atol=1e-4, rtol=1e-4), "mismatch (f32 tiled)"

    # --- Test C: bf16-streamed x (f32 accumulation, f32 vsq) -----------------
    B3, p3, k3 = 256, 128, 8
    k0, k1 = jax.random.split(jax.random.PRNGKey(2))
    x3 = jax.random.normal(k0, (B3, p3), dtype=jnp.float32).astype(jnp.bfloat16)
    v3, w3, b3 = make_params(k1, p3, k3)
    out3 = jax.block_until_ready(factorization_machine(x3, v3, w3, b3))
    # Reference on the same bf16-rounded operands the kernel sees.
    xf = x3.astype(jnp.float32)
    vb = v3.astype(jnp.bfloat16).astype(jnp.float32)
    wb = w3.astype(jnp.bfloat16).astype(jnp.float32)
    vsq = jnp.sum(v3 * v3, axis=1, keepdims=True)
    ref3 = (xf @ wb + b3
            + 0.5 * (jnp.sum((xf @ vb) ** 2, axis=1, keepdims=True)
                     - (xf * xf) @ vsq))
    assert out3.shape == (B3, 1)
    assert jnp.allclose(out3, ref3, atol=2e-2, rtol=2e-2), "mismatch (bf16)"

    print("KERNEL_OK")
</pallas_src>

<mosaic_0001>
module attributes {stable_mosaic.version = 11 : i64} {
  func.func @fm_kernel(%arg0: i32, %arg1: i32, %arg2: memref<8x32xf32, #tpu.memory_space<vmem>>, %arg3: memref<32x18xf32, #tpu.memory_space<vmem>>, %arg4: memref<1x1xf32, #tpu.memory_space<smem>>, %arg5: memref<8x1xf32, #tpu.memory_space<vmem>>, %arg6: memref<8x17xf32, #tpu.memory_space<vmem>>, %arg7: memref<8x1xf32, #tpu.memory_space<vmem>>) attributes {dimension_semantics = [#tpu.dimension_semantics<parallel>, #tpu.dimension_semantics<arbitrary>], iteration_bounds = array<i64: 1, 1>, scalar_prefetch = 0 : i64, scratch_operands = 2 : i64, tpu.core_type = #tpu.core_type<tc>, window_params = [{transform_indices = @transform_0, window_bounds = array<i64: 8, 32>}, {transform_indices = @transform_1, window_bounds = array<i64: 32, 18>}, {transform_indices = @transform_2, window_bounds = array<i64: 1, 1>}, {transform_indices = @transform_3, window_bounds = array<i64: 8, 1>}]} {
    %c0_i32 = arith.constant 0 : i32
    %0 = arith.cmpi eq, %arg1, %c0_i32 : i32
    %1 = arith.extui %0 : i1 to i32
    %c0_i32_0 = arith.constant 0 : i32
    %2 = arith.cmpi ne, %1, %c0_i32_0 : i32
    scf.if %2 {
      %cst_16 = arith.constant 0.000000e+00 : f32
      %18 = vector.broadcast %cst_16 : f32 to vector<8x17xf32>
      %c0_17 = arith.constant 0 : index
      %c0_18 = arith.constant 0 : index
      %19 = vector.load %arg6[%c0_17, %c0_18] : memref<8x17xf32, #tpu.memory_space<vmem>>, vector<8x17xf32>
      tpu.vector_store %arg6[%c0_17, %c0_18], %18 {strides = array<i32>} : memref<8x17xf32, #tpu.memory_space<vmem>>, vector<8x17xf32>,
      %cst_19 = arith.constant 0.000000e+00 : f32
      %20 = vector.broadcast %cst_19 : f32 to vector<8x1xf32>
      %c0_20 = arith.constant 0 : index
      %c0_21 = arith.constant 0 : index
      %21 = vector.load %arg7[%c0_20, %c0_21] : memref<8x1xf32, #tpu.memory_space<vmem>>, vector<8x1xf32>
      tpu.vector_store %arg7[%c0_20, %c0_21], %20 {strides = array<i32>} : memref<8x1xf32, #tpu.memory_space<vmem>>, vector<8x1xf32>,
    } else {
    }
    %c0 = arith.constant 0 : index
    %c0_1 = arith.constant 0 : index
    %3 = vector.load %arg2[%c0, %c0_1] : memref<8x32xf32, #tpu.memory_space<vmem>>, vector<8x32xf32>
    %c0_2 = arith.constant 0 : index
    %c0_3 = arith.constant 0 : index
    %4 = vector.load %arg3[%c0_2, %c0_3] : memref<32x18xf32, #tpu.memory_space<vmem>>, vector<32x17xf32>
    %c0_4 = arith.constant 0 : index
    %c0_5 = arith.constant 0 : index
    %5 = vector.load %arg6[%c0_4, %c0_5] : memref<8x17xf32, #tpu.memory_space<vmem>>, vector<8x17xf32>
    %cst = arith.constant dense<0.000000e+00> : vector<8x17xf32>
    %6 = tpu.matmul %3, %4, %cst {dimension_numbers = #tpu.dot_dimension_numbers<[1], [0], [0], [1], [0, 0, 1, 1], [], []>} : vector<8x32xf32>, vector<32x17xf32>, vector<8x17xf32> -> vector<8x17xf32>
    %7 = arith.addf %5, %6 : vector<8x17xf32>
    %c0_6 = arith.constant 0 : index
    %c0_7 = arith.constant 0 : index
    %8 = vector.load %arg6[%c0_6, %c0_7] : memref<8x17xf32, #tpu.memory_space<vmem>>, vector<8x17xf32>
    tpu.vector_store %arg6[%c0_6, %c0_7], %7 {strides = array<i32>} : memref<8x17xf32, #tpu.memory_space<vmem>>, vector<8x17xf32>,
    %c0_8 = arith.constant 0 : index
    %c0_9 = arith.constant 0 : index
    %9 = vector.load %arg7[%c0_8, %c0_9] : memref<8x1xf32, #tpu.memory_space<vmem>>, vector<8x1xf32>
    %10 = arith.mulf %3, %3 : vector<8x32xf32>
    %c0_10 = arith.constant 0 : index
    %c17 = arith.constant 17 : index
    %11 = vector.load %arg3[%c0_10, %c17] : memref<32x18xf32, #tpu.memory_space<vmem>>, vector<32x1xf32>
    %cst_11 = arith.constant dense<0.000000e+00> : vector<8x1xf32>
    %12 = tpu.matmul %10, %11, %cst_11 {dimension_numbers = #tpu.dot_dimension_numbers<[1], [0], [0], [1], [0, 0, 1, 1], [], []>} : vector<8x32xf32>, vector<32x1xf32>, vector<8x1xf32> -> vector<8x1xf32>
    %13 = arith.addf %9, %12 : vector<8x1xf32>
    %c0_12 = arith.constant 0 : index
    %c0_13 = arith.constant 0 : index
    %14 = vector.load %arg7[%c0_12, %c0_13] : memref<8x1xf32, #tpu.memory_space<vmem>>, vector<8x1xf32>
    tpu.vector_store %arg7[%c0_12, %c0_13], %13 {strides = array<i32>} : memref<8x1xf32, #tpu.memory_space<vmem>>, vector<8x1xf32>,
    %c0_i32_14 = arith.constant 0 : i32
    %15 = arith.cmpi eq, %arg1, %c0_i32_14 : i32
    %16 = arith.extui %15 : i1 to i32
    %c0_i32_15 = arith.constant 0 : i32
    %17 = arith.cmpi ne, %16, %c0_i32_15 : i32
    scf.if %17 {
      %c0_16 = arith.constant 0 : index
      %c0_17 = arith.constant 0 : index
      %18 = vector.load %arg6[%c0_16, %c0_17] : memref<8x17xf32, #tpu.memory_space<vmem>>, vector<8x17xf32>
      %19 = vector.extract_strided_slice %18 {offsets = [0, 16], sizes = [8, 1], strides = [1, 1]} : vector<8x17xf32> to vector<8x1xf32>
      %20 = arith.mulf %18, %18 : vector<8x17xf32>
      %cst_18 = arith.constant dense<0.000000e+00> : vector<8xf32>
      %21 = vector.multi_reduction <add>, %20, %cst_18 [1] : vector<8x17xf32> to vector<8xf32>
      %22 = vector.shape_cast %21 : vector<8xf32> to vector<8x1xf32>
      %23 = arith.mulf %19, %19 : vector<8x1xf32>
      %24 = arith.subf %22, %23 : vector<8x1xf32>
      %c0_19 = arith.constant 0 : index
      %c0_20 = arith.constant 0 : index
      %25 = vector.load %arg7[%c0_19, %c0_20] : memref<8x1xf32, #tpu.memory_space<vmem>>, vector<8x1xf32>
      %26 = arith.subf %24, %25 : vector<8x1xf32>
      %c0_21 = arith.constant 0 : index
      %c0_22 = arith.constant 0 : index
      %27 = memref.load %arg4[%c0_21, %c0_22] : memref<1x1xf32, #tpu.memory_space<smem>>
      %28 = vector.broadcast %27 : f32 to vector<8x1xf32>
      %29 = arith.addf %19, %28 : vector<8x1xf32>
      %cst_23 = arith.constant 5.000000e-01 : f32
      %30 = vector.broadcast %cst_23 : f32 to vector<8x1xf32>
      %31 = arith.mulf %30, %26 : vector<8x1xf32>
      %32 = arith.addf %29, %31 : vector<8x1xf32>
      %c0_24 = arith.constant 0 : index
      %c0_25 = arith.constant 0 : index
      %33 = vector.load %arg5[%c0_24, %c0_25] : memref<8x1xf32, #tpu.memory_space<vmem>>, vector<8x1xf32>
      tpu.vector_store %arg5[%c0_24, %c0_25], %32 {strides = array<i32>} : memref<8x1xf32, #tpu.memory_space<vmem>>, vector<8x1xf32>,
    } else {
    }
    return
  }
  func.func @transform_0(%arg0: i32, %arg1: i32) -> (i32, i32) {
    %c0_i32 = arith.constant 0 : i32
    return %arg0, %arg1 : i32, i32
  }
  func.func @transform_1(%arg0: i32, %arg1: i32) -> (i32, i32) {
    %c0_i32 = arith.constant 0 : i32
    %c0_i32_0 = arith.constant 0 : i32
    return %arg1, %c0_i32 : i32, i32
  }
  func.func @transform_2(%arg0: i32, %arg1: i32) -> (i32, i32) {
    %c0_i32 = arith.constant 0 : i32
    %c0_i32_0 = arith.constant 0 : i32
    %c0_i32_1 = arith.constant 0 : i32
    return %c0_i32, %c0_i32_0 : i32, i32
  }
  func.func @transform_3(%arg0: i32, %arg1: i32) -> (i32, i32) {
    %c0_i32 = arith.constant 0 : i32
    %c0_i32_0 = arith.constant 0 : i32
    return %arg0, %c0_i32 : i32, i32
  }
}

</mosaic_0001>

<llo_original>
// kernel: tpu_custom_call.1
$region0: #{tpu_custom_call.1}
  #allocation0 [shape = 'u32[]', space=smem, size = 0x4, offset = 0x4, fixed_abs, tag = 'smem constant byte address 0x4 - core index']
  #allocation1 [shape = 'u32[72,128]{1,0:T(1,128)}', space=vmem, size = 0x9000, scoped, tag = 'internal scratch']
  #allocation2 [shape = 'f32[8,17]{1,0:T(8,128)}', space=vmem, size = 0x1000, scoped, tag = 'scratch operand']
  #allocation3 [shape = 'f32[8,1]{1,0:T(8,128)}', space=vmem, size = 0x1000, scoped, tag = 'scratch operand']
  #allocation4 [shape = 'f32[1,1]{1,0:T(1,128)S(6)}', space=smem, size = 0x200, scoped, tag = 'scoped memory for tpu_custom_call.1']
  %s0 = inlined_call_operand.vmem [shape: f32[8,32], index: 0, kind: input, shape index: {}]
  %s1 = inlined_call_operand.vmem [shape: f32[32,18], index: 1, kind: input, shape index: {}]
  %s2 = inlined_call_operand.<no memory space> [shape: f32[1,1], index: 2, kind: input, shape index: {}]
  %s3 = inlined_call_operand.vmem [shape: f32[8,1], index: 3, kind: output, shape index: {}]
  %s4 = sld [smem:[#allocation0]]
  $region30: #{tpu_custom_call.1} parent=0
    _
  %s6 = ssub.s32 1, %s4
  %s7 = scalar_select 0, %s6, %s4
  %8 = sst [smem:[#allocation4]] %s2
  // Predicated region
  $region2: #{tpu_custom_call.1} parent=0 // pred_check
    _
  $region3: #{tpu_custom_call.1} parent=0 // pred_check_branch
    %10 = sbr.rel (0) target = $region5
  $region4: #{tpu_custom_call.1} parent=0 // pred_region
    _
  $region5: #{tpu_custom_call.1} parent=0 // pred_fallthru
    _
  // Predicated region
  $region6: #{tpu_custom_call.1} parent=0 // pred_check
    _
  $region7: #{tpu_custom_call.1} parent=0 // pred_check_branch
    %12 = sbr.rel (0) target = $region9
  $region8: #{tpu_custom_call.1} parent=0 // pred_region
    _
  $region9: #{tpu_custom_call.1} parent=0 // pred_fallthru
    _
  // Predicated region
  $region10: #{tpu_custom_call.1} parent=0 // pred_check
    _
  $region11: #{tpu_custom_call.1} parent=0 // pred_check_branch
    %14 = sbr.rel (0) target = $region13
  $region12: #{tpu_custom_call.1} parent=0 // pred_region
    _
  $region13: #{tpu_custom_call.1} parent=0 // pred_fallthru
    _
  %p15 = scmp.eq.s32.totalorder 0, 0
  // Predicated region
  $region14: #{tpu_custom_call.1} parent=0 // pred_check
    %p16 = pneg %p15
  $region15: #{tpu_custom_call.1} parent=0 // pred_check_branch
    %18 = sbr.rel (%p16) target = $region17
  $region16: #{tpu_custom_call.1} parent=0 // pred_region
    %vm19 = vcmask 138240
    %20 = vst.msk [vmem:[#allocation2] sm:$0xff] %vm19, 0.0
    %vm21 = vcmask 7168
    %22 = vst.msk [vmem:[#allocation3] sm:$0xff] %vm21, 0.0
  $region17: #{tpu_custom_call.1} parent=0 // pred_fallthru
    _
  %v23 = vld [vmem:[%s0] sm:$0xff]
  %v24 = vld [vmem:[%s1] sm:$0xff]
  %v25 = vld [vmem:[%s1 + $0x8] sm:$0xff]
  %v26 = vld [vmem:[%s1 + $0x10] sm:$0xff]
  %v27 = vld [vmem:[%s1 + $0x18] sm:$0xff]
  %v28 = vld [vmem:[#allocation2] sm:$0xff]
  %vm29 = vcmask 261120
  %v31 = vsel %vm29, %v23, 0
  %33 = vmatpush.msra.mxu0 0.0
  %34 = vmatpush.msra.mxu0 0.0
  %35 = vmatpush.msra.mxu0 0.0
  %36 = vmatpush.msra.mxu0 0.0
  %37 = vmatpush.msra.mxu0 0.0
  %38 = vmatpush.msra.mxu0 0.0
  %39 = vmatpush.msra.mxu0 0.0
  %40 = vmatpush.msra.mxu0 0.0
  %41 = vmatpush.msra.mxu0 0.0
  %42 = vmatpush.msra.mxu0 0.0
  %43 = vmatpush.msra.mxu0 0.0
  %44 = vmatpush.msra.mxu0 0.0
  %45 = vmatpush.msra.mxu0 %v27
  %46 = vmatpush.msra.mxu0 %v26
  %47 = vmatpush.msra.mxu0 %v25
  %48 = vmatpush.msra.mxu0 %v24
  %49 = vmatmul.f32.gmra.mxu0 %v31
  %v50 = vpop.f32.mrf.mxu0
  %v51 = vadd.f32 0.0, %v50
  %52 = vdwg.mxu0
  %v53 = vadd.f32 %v28, %v51
  %vm54 = vcmask 138240
  %55 = vst.msk [vmem:[#allocation2] sm:$0xff] %vm54, %v53
  %v56 = vld [vmem:[#allocation3] sm:$0xff]
  %v57 = vmul.f32 %v23, %v23
  %v58 = vld [vmem:[%s1] sm:$0xff]
  %v59 = vld [vmem:[%s1 + $0x8] sm:$0xff]
  %v60 = vld [vmem:[%s1 + $0x10] sm:$0xff]
  %v61 = vld [vmem:[%s1 + $0x18] sm:$0xff]
  %66 = vrot.lane.b32.xlu0 %v58, 111
  %v67 = vpop.permute.xlu0 %66
  %68 = vrot.lane.b32.xlu0 %v59, 111
  %v69 = vpop.permute.xlu0 %68
  %70 = vrot.lane.b32.xlu0 %v60, 111
  %v71 = vpop.permute.xlu0 %70
  %72 = vrot.lane.b32.xlu0 %v61, 111
  %v73 = vpop.permute.xlu0 %72
  %v79 = vsel %vm29, %v57, 0
  %81 = vmatpush.msra.mxu0 0.0
  %82 = vmatpush.msra.mxu0 0.0
  %83 = vmatpush.msra.mxu0 0.0
  %84 = vmatpush.msra.mxu0 0.0
  %85 = vmatpush.msra.mxu0 0.0
  %86 = vmatpush.msra.mxu0 0.0
  %87 = vmatpush.msra.mxu0 0.0
  %88 = vmatpush.msra.mxu0 0.0
  %89 = vmatpush.msra.mxu0 0.0
  %90 = vmatpush.msra.mxu0 0.0
  %91 = vmatpush.msra.mxu0 0.0
  %92 = vmatpush.msra.mxu0 0.0
  %93 = vmatpush.msra.mxu0 %v73
  %94 = vmatpush.msra.mxu0 %v71
  %95 = vmatpush.msra.mxu0 %v69
  %96 = vmatpush.msra.mxu0 %v67
  %97 = vmatmul.f32.gmra.mxu0 %v79
  %v98 = vpop.f32.mrf.mxu0
  %v99 = vadd.f32 0.0, %v98
  %100 = vdwg.mxu0
  %v101 = vadd.f32 %v56, %v99
  %vm102 = vcmask 7168
  %103 = vst.msk [vmem:[#allocation3] sm:$0xff] %vm102, %v101
  // Predicated region
  $region18: #{tpu_custom_call.1} parent=0 // pred_check
    %p104 = pneg %p15
  $region19: #{tpu_custom_call.1} parent=0 // pred_check_branch
    %106 = sbr.rel (%p104) target = $region21
  $region20: #{tpu_custom_call.1} parent=0 // pred_region
    %v107 = vld [vmem:[#allocation2] sm:$0xff]
    %v108 = vmul.f32 %v107, %v107
    %v109 = vsel %vm54, %v108, 0.0
    %110 = vadd.xlane.f32.xlu0 %v109
    %v111 = vpop.xlane.xlu0 %110
    %v112 = vsub.f32 %v111, %v108
    %v113 = vld [vmem:[#allocation3] sm:$0xff]
    %115 = vrot.lane.b32.xlu0 %v113, 16
    %v116 = vpop.permute.xlu0 %115
    %v118 = vsub.f32 %v112, %v116
    %s119 = sld [smem:[#allocation4]]
    %v120 = vstv %s119
    %v121 = vadd.f32 %v107, %v120
    %v122 = vmul.f32 %v118, 0.5
    %v123 = vadd.f32 %v121, %v122
    %125 = vrot.lane.b32.xlu0 %v123, 112
    %v126 = vpop.permute.xlu0 %125
    %128 = vst.msk [vmem:[%s3] sm:$0xff] %vm102, %v126
  $region21: #{tpu_custom_call.1} parent=0 // pred_fallthru
    _
  // Predicated region
  $region22: #{tpu_custom_call.1} parent=0 // pred_check
    _
  $region23: #{tpu_custom_call.1} parent=0 // pred_check_branch
    %130 = sbr.rel (0) target = $region25
  $region24: #{tpu_custom_call.1} parent=0 // pred_region
    _
  $region25: #{tpu_custom_call.1} parent=0 // pred_fallthru
    _
  // Predicated region
  $region26: #{tpu_custom_call.1} parent=0 // pred_check
    _
  $region27: #{tpu_custom_call.1} parent=0 // pred_check_branch
    %132 = sbr.rel (0) target = $region29
  $region28: #{tpu_custom_call.1} parent=0 // pred_region
    _
  $region29: #{tpu_custom_call.1} parent=0 // pred_fallthru
    _

</llo_original>
